<compile_context>
chip_gen: v7x
topology: tpu7x:2x2x1
jax: 0.10.0
libtpu: 0.0.40
codegen_flags: <defaults>
</compile_context>

<pallas_src>
import jax
import jax.numpy as jnp
from jax.experimental import pallas as pl
from jax.experimental.pallas import tpu as pltpu


def _round_up(x, m):
    return ((x + m - 1) // m) * m


def critic_kernel(state_ref, item_ref,
                  w1s_ref, w1i_ref, b1_ref,
                  w2_ref, b2_ref,
                  w3_ref, b3_ref,
                  w4_ref, b4_ref,
                  w5_ref, b5_ref,
                  out_ref):
    w_dtype = w1s_ref.dtype

    state = state_ref[...]
    item = item_ref[...]

    # mask = torch.all(torch.isfinite(item), dim=-1).unsqueeze(-1)
    mask = jnp.all(jnp.isfinite(item), axis=-1, keepdims=True)
    # literal PyTorch semantics: item * mask (so NaN * 0 stays NaN)
    masked_item = item * mask.astype(item.dtype)

    # fc1 on cat((state, masked_item), -1)  ==  state@W1s + masked_item@W1i
    x = (jnp.dot(state.astype(w_dtype), w1s_ref[...],
                 preferred_element_type=jnp.float32)
         + jnp.dot(masked_item.astype(w_dtype), w1i_ref[...],
                   preferred_element_type=jnp.float32)
         + b1_ref[...])
    x = jnp.maximum(x, 0.0)

    def dense_relu(x, w_ref, b_ref):
        y = jnp.dot(x.astype(w_dtype), w_ref[...],
                    preferred_element_type=jnp.float32) + b_ref[...]
        return jnp.maximum(y, 0.0)

    x = dense_relu(x, w2_ref, b2_ref)   # fc2
    x = dense_relu(x, w3_ref, b3_ref)   # fc3
    x = dense_relu(x, w4_ref, b4_ref)   # fc4

    # fc5: single output column -> VPU multiply + lane reduction instead of an
    # MXU pass with N=1 (w5 stored pre-transposed as (1, 256)); bias is an
    # SMEM scalar.
    w5_row = w5_ref[...].astype(jnp.float32)                 # (1, 256)
    q = jnp.sum(x * w5_row, axis=-1, keepdims=True) + b5_ref[0, 0]
    out_ref[...] = q


def init_params(key, state_size, item_size, hidden_size):
    """Canonical f32 params, PyTorch Linear-style init U(-1/sqrt(fan_in), ...).

    Weights are stored as (in, out) (transposed vs PyTorch's (out, in)) so the
    reference / kernel compute y = x @ W + b.
    """
    sizes = [
        (state_size + item_size, hidden_size),   # fc1
        (hidden_size, hidden_size),               # fc2
        (hidden_size, hidden_size // 2),          # fc3
        (hidden_size // 2, 256),                  # fc4
        (256, 1),                                 # fc5
    ]
    params = []
    for (fan_in, fan_out) in sizes:
        key, kw, kb = jax.random.split(key, 3)
        bound = 1.0 / (fan_in ** 0.5)
        w = jax.random.uniform(kw, (fan_in, fan_out), jnp.float32, -bound, bound)
        b = jax.random.uniform(kb, (1, fan_out), jnp.float32, -bound, bound)
        params.append((w, b))
    return params


def prepare_kernel_params(params, state_size, weight_dtype=jnp.float32):
    """One-time prep: split W1, transpose w5 to a row, cast weights."""
    (w1, b1), (w2, b2), (w3, b3), (w4, b4), (w5, b5) = params
    return dict(
        w1s=w1[:state_size, :].astype(weight_dtype),
        w1i=w1[state_size:, :].astype(weight_dtype),
        b1=b1.astype(jnp.float32),
        w2=w2.astype(weight_dtype), b2=b2.astype(jnp.float32),
        w3=w3.astype(weight_dtype), b3=b3.astype(jnp.float32),
        w4=w4.astype(weight_dtype), b4=b4.astype(jnp.float32),
        w5_row=w5.T.astype(weight_dtype),              # (1, 256)
        b5=b5.reshape(1, 1).astype(jnp.float32),       # SMEM scalar
    )


def critic_forward(state, item, kp, *, batch_tile=256):
    batch = state.shape[0]
    state_size = state.shape[1]
    item_size = item.shape[1]

    # Batch tile: multiple of 8 sublanes; 256 aligns with the MXU M dimension
    # on v6e/v7x (and is 2x the v5e MXU M) while keeping the per-step VMEM
    # footprint tiny, so the same choice is safe on v5e/v6e/v7x.
    tb = _round_up(min(batch_tile, _round_up(batch, 8)), 8)
    padded_batch = _round_up(batch, tb)
    if padded_batch != batch:
        pad = padded_batch - batch
        state = jnp.pad(state, ((0, pad), (0, 0)))
        item = jnp.pad(item, ((0, pad), (0, 0)))

    grid = (padded_batch // tb,)

    def batch_spec(feat):
        return pl.BlockSpec((tb, feat), lambda i: (i, 0))

    def resident_spec(arr):
        # Full-array block + constant index map -> stays VMEM-resident across
        # grid steps (no re-DMA of the weights).
        return pl.BlockSpec(arr.shape, lambda i: (0, 0))

    weights = (kp["w1s"], kp["w1i"], kp["b1"],
               kp["w2"], kp["b2"],
               kp["w3"], kp["b3"],
               kp["w4"], kp["b4"],
               kp["w5_row"])
    b5 = kp["b5"]

    in_specs = ([batch_spec(state_size), batch_spec(item_size)]
                + [resident_spec(w) for w in weights]
                + [pl.BlockSpec((1, 1), lambda i: (0, 0),
                                memory_space=pltpu.MemorySpace.SMEM)])
    out_specs = pl.BlockSpec((tb, 1), lambda i: (i, 0))

    hidden = kp["w2"].shape[0]
    flops_per_row = 2 * ((state_size + item_size) * hidden
                         + hidden * hidden
                         + hidden * (hidden // 2)
                         + (hidden // 2) * 256
                         + 256)
    bytes_weights = sum(int(w.size) * w.dtype.itemsize for w in weights) + 4
    bytes_acts = padded_batch * (state_size + item_size + 1) * 4
    cost = pl.CostEstimate(flops=padded_batch * flops_per_row,
                           transcendentals=0,
                           bytes_accessed=bytes_weights + bytes_acts)

    out = pl.pallas_call(
        critic_kernel,
        out_shape=jax.ShapeDtypeStruct((padded_batch, 1), jnp.float32),
        grid=grid,
        in_specs=in_specs,
        out_specs=out_specs,
        compiler_params=pltpu.CompilerParams(
            dimension_semantics=("parallel",),          # megacore on v7x
            vmem_limit_bytes=32 * 1024 * 1024),         # safe on v5e/v6e/v7x
        cost_estimate=cost,
    )(state, item, *weights, b5)

    return out[:batch]


def critic_reference(state, item, params):
    """Pure-JAX f32 reference (original module semantics)."""
    (w1, b1), (w2, b2), (w3, b3), (w4, b4), (w5, b5) = params
    mask = jnp.all(jnp.isfinite(item), axis=-1, keepdims=True)
    x = jnp.concatenate([state, item * mask.astype(item.dtype)], axis=-1)
    x = jax.nn.relu(x @ w1 + b1)
    x = jax.nn.relu(x @ w2 + b2)
    x = jax.nn.relu(x @ w3 + b3)
    x = jax.nn.relu(x @ w4 + b4)
    return x @ w5 + b5


if __name__ == "__main__":
    batch = 2
    state_size = 16
    item_size = 16
    hidden_size = 32

    key = jax.random.PRNGKey(0)
    k_state, k_item, k_params = jax.random.split(key, 3)

    state = jax.random.normal(k_state, (batch, state_size), jnp.float32)
    item = jax.random.normal(k_item, (batch, item_size), jnp.float32)

    params = init_params(k_params, state_size, item_size, hidden_size)
    q_ref = critic_reference(state, item, params)

    # f32 weights: exact original-module numerics.
    kp_f32 = prepare_kernel_params(params, state_size, jnp.float32)
    q_f32 = jax.block_until_ready(critic_forward(state, item, kp_f32))
    assert q_f32.shape == (batch, 1)
    assert jnp.allclose(q_f32, q_ref, atol=1e-5, rtol=1e-5)

    # bf16 weights / bf16 MXU operands with f32 accumulation (perf path).
    kp_bf16 = prepare_kernel_params(params, state_size, jnp.bfloat16)
    q_bf16 = jax.block_until_ready(critic_forward(state, item, kp_bf16))
    assert q_bf16.shape == (batch, 1)
    assert jnp.allclose(q_bf16, q_ref, atol=5e-2, rtol=5e-2)

    print("KERNEL_OK")
</pallas_src>

<mosaic_0001>
module attributes {stable_mosaic.version = 11 : i64} {
  func.func @critic_kernel(%arg0: i32, %arg1: memref<8x16xf32, #tpu.memory_space<vmem>>, %arg2: memref<8x16xf32, #tpu.memory_space<vmem>>, %arg3: memref<16x32xf32, #tpu.memory_space<vmem>>, %arg4: memref<16x32xf32, #tpu.memory_space<vmem>>, %arg5: memref<1x32xf32, #tpu.memory_space<vmem>>, %arg6: memref<32x32xf32, #tpu.memory_space<vmem>>, %arg7: memref<1x32xf32, #tpu.memory_space<vmem>>, %arg8: memref<32x16xf32, #tpu.memory_space<vmem>>, %arg9: memref<1x16xf32, #tpu.memory_space<vmem>>, %arg10: memref<16x256xf32, #tpu.memory_space<vmem>>, %arg11: memref<1x256xf32, #tpu.memory_space<vmem>>, %arg12: memref<1x256xf32, #tpu.memory_space<vmem>>, %arg13: memref<1x1xf32, #tpu.memory_space<smem>>, %arg14: memref<8x1xf32, #tpu.memory_space<vmem>>) attributes {dimension_semantics = [#tpu.dimension_semantics<parallel>], iteration_bounds = array<i64: 1>, scalar_prefetch = 0 : i64, scratch_operands = 0 : i64, tpu.core_type = #tpu.core_type<tc>, window_params = [{transform_indices = @transform_0, window_bounds = array<i64: 8, 16>}, {transform_indices = @transform_1, window_bounds = array<i64: 8, 16>}, {pipeline_mode = #tpu.pipeline_mode<synchronous>, transform_indices = @transform_2, window_bounds = array<i64: 16, 32>}, {pipeline_mode = #tpu.pipeline_mode<synchronous>, transform_indices = @transform_3, window_bounds = array<i64: 16, 32>}, {pipeline_mode = #tpu.pipeline_mode<synchronous>, transform_indices = @transform_4, window_bounds = array<i64: 1, 32>}, {pipeline_mode = #tpu.pipeline_mode<synchronous>, transform_indices = @transform_5, window_bounds = array<i64: 32, 32>}, {pipeline_mode = #tpu.pipeline_mode<synchronous>, transform_indices = @transform_6, window_bounds = array<i64: 1, 32>}, {pipeline_mode = #tpu.pipeline_mode<synchronous>, transform_indices = @transform_7, window_bounds = array<i64: 32, 16>}, {pipeline_mode = #tpu.pipeline_mode<synchronous>, transform_indices = @transform_8, window_bounds = array<i64: 1, 16>}, {pipeline_mode = #tpu.pipeline_mode<synchronous>, transform_indices = @transform_9, window_bounds = array<i64: 16, 256>}, {pipeline_mode = #tpu.pipeline_mode<synchronous>, transform_indices = @transform_10, window_bounds = array<i64: 1, 256>}, {pipeline_mode = #tpu.pipeline_mode<synchronous>, transform_indices = @transform_11, window_bounds = array<i64: 1, 256>}, {transform_indices = @transform_12, window_bounds = array<i64: 1, 1>}, {transform_indices = @transform_13, window_bounds = array<i64: 8, 1>}]} {
    %c0 = arith.constant 0 : index
    %c0_0 = arith.constant 0 : index
    %0 = vector.load %arg1[%c0, %c0_0] : memref<8x16xf32, #tpu.memory_space<vmem>>, vector<8x16xf32>
    %c0_1 = arith.constant 0 : index
    %c0_2 = arith.constant 0 : index
    %1 = vector.load %arg2[%c0_1, %c0_2] : memref<8x16xf32, #tpu.memory_space<vmem>>, vector<8x16xf32>
    %2 = tpu.weird %1 : vector<8x16xf32> -> vector<8x16xi1>
    %cst = arith.constant dense<true> : vector<8x16xi1>
    %3 = arith.xori %2, %cst : vector<8x16xi1>
    %cst_3 = arith.constant 1.000000e+00 : f32
    %cst_4 = arith.constant 0.000000e+00 : f32
    %4 = vector.broadcast %cst_3 : f32 to vector<8x16xf32>
    %5 = vector.broadcast %cst_4 : f32 to vector<8x16xf32>
    %6 = arith.select %3, %4, %5 : vector<8x16xi1>, vector<8x16xf32>
    %cst_5 = arith.constant dense<0x7F800000> : vector<8xf32>
    %7 = vector.multi_reduction <minimumf>, %6, %cst_5 [1] : vector<8x16xf32> to vector<8xf32>
    %cst_6 = arith.constant 0.000000e+00 : f32
    %8 = vector.broadcast %cst_6 : f32 to vector<8xf32>
    %9 = arith.cmpf ogt, %7, %8 : vector<8xf32>
    %10 = vector.shape_cast %9 : vector<8xi1> to vector<8x1xi1>
    %11 = arith.extui %10 : vector<8x1xi1> to vector<8x1xi32>
    %12 = arith.sitofp %11 : vector<8x1xi32> to vector<8x1xf32>
    %13 = vector.broadcast %12 : vector<8x1xf32> to vector<8x16xf32>
    %14 = arith.mulf %1, %13 : vector<8x16xf32>
    %c0_7 = arith.constant 0 : index
    %c0_8 = arith.constant 0 : index
    %15 = vector.load %arg3[%c0_7, %c0_8] : memref<16x32xf32, #tpu.memory_space<vmem>>, vector<16x32xf32>
    %cst_9 = arith.constant dense<0.000000e+00> : vector<8x32xf32>
    %16 = tpu.matmul %0, %15, %cst_9 {dimension_numbers = #tpu.dot_dimension_numbers<[1], [0], [0], [1], [0, 0, 1, 1], [], []>} : vector<8x16xf32>, vector<16x32xf32>, vector<8x32xf32> -> vector<8x32xf32>
    %c0_10 = arith.constant 0 : index
    %c0_11 = arith.constant 0 : index
    %17 = vector.load %arg4[%c0_10, %c0_11] : memref<16x32xf32, #tpu.memory_space<vmem>>, vector<16x32xf32>
    %cst_12 = arith.constant dense<0.000000e+00> : vector<8x32xf32>
    %18 = tpu.matmul %14, %17, %cst_12 {dimension_numbers = #tpu.dot_dimension_numbers<[1], [0], [0], [1], [0, 0, 1, 1], [], []>} : vector<8x16xf32>, vector<16x32xf32>, vector<8x32xf32> -> vector<8x32xf32>
    %19 = arith.addf %16, %18 : vector<8x32xf32>
    %c0_13 = arith.constant 0 : index
    %c0_14 = arith.constant 0 : index
    %20 = vector.load %arg5[%c0_13, %c0_14] : memref<1x32xf32, #tpu.memory_space<vmem>>, vector<1x32xf32>
    %21 = vector.broadcast %20 : vector<1x32xf32> to vector<8x32xf32>
    %22 = arith.addf %19, %21 : vector<8x32xf32>
    %cst_15 = arith.constant 0.000000e+00 : f32
    %23 = vector.broadcast %cst_15 : f32 to vector<8x32xf32>
    %24 = arith.maximumf %22, %23 : vector<8x32xf32>
    %c0_16 = arith.constant 0 : index
    %c0_17 = arith.constant 0 : index
    %25 = vector.load %arg6[%c0_16, %c0_17] : memref<32x32xf32, #tpu.memory_space<vmem>>, vector<32x32xf32>
    %cst_18 = arith.constant dense<0.000000e+00> : vector<8x32xf32>
    %26 = tpu.matmul %24, %25, %cst_18 {dimension_numbers = #tpu.dot_dimension_numbers<[1], [0], [0], [1], [0, 0, 1, 1], [], []>} : vector<8x32xf32>, vector<32x32xf32>, vector<8x32xf32> -> vector<8x32xf32>
    %c0_19 = arith.constant 0 : index
    %c0_20 = arith.constant 0 : index
    %27 = vector.load %arg7[%c0_19, %c0_20] : memref<1x32xf32, #tpu.memory_space<vmem>>, vector<1x32xf32>
    %28 = vector.broadcast %27 : vector<1x32xf32> to vector<8x32xf32>
    %29 = arith.addf %26, %28 : vector<8x32xf32>
    %cst_21 = arith.constant 0.000000e+00 : f32
    %30 = vector.broadcast %cst_21 : f32 to vector<8x32xf32>
    %31 = arith.maximumf %29, %30 : vector<8x32xf32>
    %c0_22 = arith.constant 0 : index
    %c0_23 = arith.constant 0 : index
    %32 = vector.load %arg8[%c0_22, %c0_23] : memref<32x16xf32, #tpu.memory_space<vmem>>, vector<32x16xf32>
    %cst_24 = arith.constant dense<0.000000e+00> : vector<8x16xf32>
    %33 = tpu.matmul %31, %32, %cst_24 {dimension_numbers = #tpu.dot_dimension_numbers<[1], [0], [0], [1], [0, 0, 1, 1], [], []>} : vector<8x32xf32>, vector<32x16xf32>, vector<8x16xf32> -> vector<8x16xf32>
    %c0_25 = arith.constant 0 : index
    %c0_26 = arith.constant 0 : index
    %34 = vector.load %arg9[%c0_25, %c0_26] : memref<1x16xf32, #tpu.memory_space<vmem>>, vector<1x16xf32>
    %35 = vector.broadcast %34 : vector<1x16xf32> to vector<8x16xf32>
    %36 = arith.addf %33, %35 : vector<8x16xf32>
    %cst_27 = arith.constant 0.000000e+00 : f32
    %37 = vector.broadcast %cst_27 : f32 to vector<8x16xf32>
    %38 = arith.maximumf %36, %37 : vector<8x16xf32>
    %c0_28 = arith.constant 0 : index
    %c0_29 = arith.constant 0 : index
    %39 = vector.load %arg10[%c0_28, %c0_29] : memref<16x256xf32, #tpu.memory_space<vmem>>, vector<16x256xf32>
    %cst_30 = arith.constant dense<0.000000e+00> : vector<8x256xf32>
    %40 = tpu.matmul %38, %39, %cst_30 {dimension_numbers = #tpu.dot_dimension_numbers<[1], [0], [0], [1], [0, 0, 1, 1], [], []>} : vector<8x16xf32>, vector<16x256xf32>, vector<8x256xf32> -> vector<8x256xf32>
    %c0_31 = arith.constant 0 : index
    %c0_32 = arith.constant 0 : index
    %41 = vector.load %arg11[%c0_31, %c0_32] : memref<1x256xf32, #tpu.memory_space<vmem>>, vector<1x256xf32>
    %42 = vector.broadcast %41 : vector<1x256xf32> to vector<8x256xf32>
    %43 = arith.addf %40, %42 : vector<8x256xf32>
    %cst_33 = arith.constant 0.000000e+00 : f32
    %44 = vector.broadcast %cst_33 : f32 to vector<8x256xf32>
    %45 = arith.maximumf %43, %44 : vector<8x256xf32>
    %c0_34 = arith.constant 0 : index
    %c0_35 = arith.constant 0 : index
    %46 = vector.load %arg12[%c0_34, %c0_35] : memref<1x256xf32, #tpu.memory_space<vmem>>, vector<1x256xf32>
    %47 = vector.broadcast %46 : vector<1x256xf32> to vector<8x256xf32>
    %48 = arith.mulf %45, %47 : vector<8x256xf32>
    %cst_36 = arith.constant dense<0.000000e+00> : vector<8xf32>
    %49 = vector.multi_reduction <add>, %48, %cst_36 [1] : vector<8x256xf32> to vector<8xf32>
    %50 = vector.shape_cast %49 : vector<8xf32> to vector<8x1xf32>
    %c0_37 = arith.constant 0 : index
    %c0_38 = arith.constant 0 : index
    %51 = memref.load %arg13[%c0_37, %c0_38] : memref<1x1xf32, #tpu.memory_space<smem>>
    %52 = vector.broadcast %51 : f32 to vector<8x1xf32>
    %53 = arith.addf %50, %52 : vector<8x1xf32>
    %c0_39 = arith.constant 0 : index
    %c0_40 = arith.constant 0 : index
    %54 = vector.load %arg14[%c0_39, %c0_40] : memref<8x1xf32, #tpu.memory_space<vmem>>, vector<8x1xf32>
    tpu.vector_store %arg14[%c0_39, %c0_40], %53 {strides = array<i32>} : memref<8x1xf32, #tpu.memory_space<vmem>>, vector<8x1xf32>,
    return
  }
  func.func @transform_0(%arg0: i32) -> (i32, i32) {
    %c0_i32 = arith.constant 0 : i32
    %c0_i32_0 = arith.constant 0 : i32
    return %arg0, %c0_i32 : i32, i32
  }
  func.func @transform_1(%arg0: i32) -> (i32, i32) {
    %c0_i32 = arith.constant 0 : i32
    %c0_i32_0 = arith.constant 0 : i32
    return %arg0, %c0_i32 : i32, i32
  }
  func.func @transform_2(%arg0: i32) -> (i32, i32) {
    %c0_i32 = arith.constant 0 : i32
    %c0_i32_0 = arith.constant 0 : i32
    %c0_i32_1 = arith.constant 0 : i32
    return %c0_i32, %c0_i32_0 : i32, i32
  }
  func.func @transform_3(%arg0: i32) -> (i32, i32) {
    %c0_i32 = arith.constant 0 : i32
    %c0_i32_0 = arith.constant 0 : i32
    %c0_i32_1 = arith.constant 0 : i32
    return %c0_i32, %c0_i32_0 : i32, i32
  }
  func.func @transform_4(%arg0: i32) -> (i32, i32) {
    %c0_i32 = arith.constant 0 : i32
    %c0_i32_0 = arith.constant 0 : i32
    %c0_i32_1 = arith.constant 0 : i32
    return %c0_i32, %c0_i32_0 : i32, i32
  }
  func.func @transform_5(%arg0: i32) -> (i32, i32) {
    %c0_i32 = arith.constant 0 : i32
    %c0_i32_0 = arith.constant 0 : i32
    %c0_i32_1 = arith.constant 0 : i32
    return %c0_i32, %c0_i32_0 : i32, i32
  }
  func.func @transform_6(%arg0: i32) -> (i32, i32) {
    %c0_i32 = arith.constant 0 : i32
    %c0_i32_0 = arith.constant 0 : i32
    %c0_i32_1 = arith.constant 0 : i32
    return %c0_i32, %c0_i32_0 : i32, i32
  }
  func.func @transform_7(%arg0: i32) -> (i32, i32) {
    %c0_i32 = arith.constant 0 : i32
    %c0_i32_0 = arith.constant 0 : i32
    %c0_i32_1 = arith.constant 0 : i32
    return %c0_i32, %c0_i32_0 : i32, i32
  }
  func.func @transform_8(%arg0: i32) -> (i32, i32) {
    %c0_i32 = arith.constant 0 : i32
    %c0_i32_0 = arith.constant 0 : i32
    %c0_i32_1 = arith.constant 0 : i32
    return %c0_i32, %c0_i32_0 : i32, i32
  }
  func.func @transform_9(%arg0: i32) -> (i32, i32) {
    %c0_i32 = arith.constant 0 : i32
    %c0_i32_0 = arith.constant 0 : i32
    %c0_i32_1 = arith.constant 0 : i32
    return %c0_i32, %c0_i32_0 : i32, i32
  }
  func.func @transform_10(%arg0: i32) -> (i32, i32) {
    %c0_i32 = arith.constant 0 : i32
    %c0_i32_0 = arith.constant 0 : i32
    %c0_i32_1 = arith.constant 0 : i32
    return %c0_i32, %c0_i32_0 : i32, i32
  }
  func.func @transform_11(%arg0: i32) -> (i32, i32) {
    %c0_i32 = arith.constant 0 : i32
    %c0_i32_0 = arith.constant 0 : i32
    %c0_i32_1 = arith.constant 0 : i32
    return %c0_i32, %c0_i32_0 : i32, i32
  }
  func.func @transform_12(%arg0: i32) -> (i32, i32) {
    %c0_i32 = arith.constant 0 : i32
    %c0_i32_0 = arith.constant 0 : i32
    %c0_i32_1 = arith.constant 0 : i32
    return %c0_i32, %c0_i32_0 : i32, i32
  }
  func.func @transform_13(%arg0: i32) -> (i32, i32) {
    %c0_i32 = arith.constant 0 : i32
    %c0_i32_0 = arith.constant 0 : i32
    return %arg0, %c0_i32 : i32, i32
  }
}

</mosaic_0001>

<llo_original>
// kernel: tpu_custom_call.1
$region0: #{tpu_custom_call.1}
  #allocation0 [shape = 'u32[]', space=smem, size = 0x4, offset = 0x4, fixed_abs, tag = 'smem constant byte address 0x4 - core index']
  #allocation1 [shape = 'u32[144,128]{1,0:T(1,128)}', space=vmem, size = 0x12000, scoped, tag = 'internal scratch']
  #allocation2 [shape = 'f32[1,1]{1,0:T(1,128)S(6)}', space=smem, size = 0x200, scoped, tag = 'scoped memory for tpu_custom_call.1']
  %s0 = inlined_call_operand.hbm [shape: f32[8,16], index: 0, kind: input, shape index: {}]
  %s1 = inlined_call_operand.hbm [shape: f32[8,16], index: 1, kind: input, shape index: {}]
  %s2 = inlined_call_operand.hbm [shape: f32[16,32], index: 2, kind: input, shape index: {}]
  %s3 = inlined_call_operand.hbm [shape: f32[16,32], index: 3, kind: input, shape index: {}]
  %s4 = inlined_call_operand.hbm [shape: f32[1,32], index: 4, kind: input, shape index: {}]
  %s5 = inlined_call_operand.vmem [shape: f32[32,32], index: 5, kind: input, shape index: {}]
  %s6 = inlined_call_operand.vmem [shape: f32[1,32], index: 6, kind: input, shape index: {}]
  %s7 = inlined_call_operand.vmem [shape: f32[32,16], index: 7, kind: input, shape index: {}]
  %s8 = inlined_call_operand.vmem [shape: f32[1,16], index: 8, kind: input, shape index: {}]
  %s9 = inlined_call_operand.vmem [shape: f32[16,256], index: 9, kind: input, shape index: {}]
  %s10 = inlined_call_operand.vmem [shape: f32[1,256], index: 10, kind: input, shape index: {}]
  %s11 = inlined_call_operand.vmem [shape: f32[1,256], index: 11, kind: input, shape index: {}]
  %s12 = inlined_call_operand.<no memory space> [shape: f32[1,1], index: 12, kind: input, shape index: {}]
  %s13 = inlined_call_operand.vmem [shape: f32[8,1], index: 13, kind: output, shape index: {}]
  %s14 = sld [smem:[#allocation0]]
  $region82: #{tpu_custom_call.1} parent=0
    _
  %s16 = ssub.s32 1, %s14
  %s17 = scalar_select 0, %s16, %s14
  %18 = sst [smem:[#allocation2]] %s12
  $region1: #{tpu_custom_call.1} parent=0
    #allocation3 [shape = 'u8[4096]{0}', space=vmem, size = 0x1000, scoped, tag = 'input window, operand 0, single buffered']
    #allocation4 [shape = 's32[1]{0}', space=sflag, size = 0x4, scoped, tag = 'scoped memory for tpu_custom_call.1']
    #allocation5 [shape = 'u8[4096]{0}', space=vmem, size = 0x1000, scoped, tag = 'input window, operand 1, single buffered']
    #allocation6 [shape = 's32[1]{0}', space=sflag, size = 0x4, scoped, tag = 'scoped memory for tpu_custom_call.1']
    #allocation7 [shape = 'u8[8192]{0}', space=vmem, size = 0x2000, scoped, tag = 'input window, operand 2, single buffered']
    #allocation8 [shape = 'u8[8192]{0}', space=vmem, size = 0x2000, scoped, tag = 'input window, operand 3, single buffered']
    #allocation9 [shape = 's32[1]{0}', space=sflag, size = 0x4, scoped, tag = 'scoped memory for tpu_custom_call.1']
    #allocation10 [shape = 'u8[512]{0}', space=vmem, size = 0x400, scoped, tag = 'input window, operand 4, single buffered']
    %19 = vsyncpa [#allocation4], 0
    %20 = vsyncpa [#allocation6], 0
    %21 = vsyncpa [#allocation9], 0
    // Predicated region
    $region2: #{tpu_custom_call.1} parent=1 // pred_check
      _
    $region3: #{tpu_custom_call.1} parent=1 // pred_check_branch
      %23 = sbr.rel (0) target = $region5
    $region4: #{tpu_custom_call.1} parent=1 // pred_region
      %s25 = ssub.s32 128, 128
      %26 = vsyncadd [#allocation4], %s25
      %s28 = sshll.u32 [#allocation3], 4
      %s29 = int_to_ptr.vmem [resolvable:$true] %s28
      %31 = dma.hbm_to_vmem [thread:$0]  %s0, 128, %s29, [#allocation4]
    $region5: #{tpu_custom_call.1} parent=1 // pred_fallthru
      _
    // Predicated region
    $region6: #{tpu_custom_call.1} parent=1 // pred_check
      _
    $region7: #{tpu_custom_call.1} parent=1 // pred_check_branch
      %33 = sbr.rel (0) target = $region9
    $region8: #{tpu_custom_call.1} parent=1 // pred_region
      %s35 = ssub.s32 128, 128
      %36 = vsyncadd [#allocation6], %s35
      %s38 = sshll.u32 [#allocation5], 4
      %s39 = int_to_ptr.vmem [resolvable:$true] %s38
      %41 = dma.hbm_to_vmem [thread:$0]  %s1, 128, %s39, [#allocation6]
    $region9: #{tpu_custom_call.1} parent=1 // pred_fallthru
      _
    // Predicated region
    $region10: #{tpu_custom_call.1} parent=1 // pred_check
      _
    $region11: #{tpu_custom_call.1} parent=1 // pred_check_branch
      %43 = sbr.rel (0) target = $region13
    $region12: #{tpu_custom_call.1} parent=1 // pred_region
      %s45 = ssub.s32 256, 256
      %46 = vsyncadd [#allocation6], %s45
      %s47 = sshll.u32 [#allocation7], 4
      %s48 = int_to_ptr.vmem [resolvable:$true] %s47
      %53 = dma.hbm_to_vmem [thread:$0]  %s2, 256, %s48, [#allocation6], 128, 128, 8
    $region13: #{tpu_custom_call.1} parent=1 // pred_fallthru
      _
    // Predicated region
    $region14: #{tpu_custom_call.1} parent=1 // pred_check
      _
    $region15: #{tpu_custom_call.1} parent=1 // pred_check_branch
      %55 = sbr.rel (0) target = $region17
    $region16: #{tpu_custom_call.1} parent=1 // pred_region
      %s57 = ssub.s32 256, 256
      %58 = vsyncadd [#allocation9], %s57
      %s59 = sshll.u32 [#allocation8], 4
      %s60 = int_to_ptr.vmem [resolvable:$true] %s59
      %65 = dma.hbm_to_vmem [thread:$0]  %s3, 256, %s60, [#allocation9], 128, 128, 8
    $region17: #{tpu_custom_call.1} parent=1 // pred_fallthru
      _
    // Predicated region
    $region18: #{tpu_custom_call.1} parent=1 // pred_check
      _
    $region19: #{tpu_custom_call.1} parent=1 // pred_check_branch
      %67 = sbr.rel (0) target = $region21
    $region20: #{tpu_custom_call.1} parent=1 // pred_region
      %s69 = ssub.s32 16, 16
      %70 = vsyncadd [#allocation9], %s69
      %s72 = sshll.u32 [#allocation10], 4
      %s73 = int_to_ptr.vmem [resolvable:$true] %s72
      %75 = dma.hbm_to_vmem [thread:$0]  %s4, 16, %s73, [#allocation9]
    $region21: #{tpu_custom_call.1} parent=1 // pred_fallthru
      _
    // Predicated region
    $region22: #{tpu_custom_call.1} parent=1 // pred_check
      _
    $region23: #{tpu_custom_call.1} parent=1 // pred_check_branch
      %77 = sbr.rel (0) target = $region25
    $region24: #{tpu_custom_call.1} parent=1 // pred_region
      _
    $region25: #{tpu_custom_call.1} parent=1 // pred_fallthru
      _
    // Predicated region
    $region26: #{tpu_custom_call.1} parent=1 // pred_check
      _
    $region27: #{tpu_custom_call.1} parent=1 // pred_check_branch
      %79 = sbr.rel (0) target = $region29
    $region28: #{tpu_custom_call.1} parent=1 // pred_region
      _
    $region29: #{tpu_custom_call.1} parent=1 // pred_fallthru
      _
    // Predicated region
    $region30: #{tpu_custom_call.1} parent=1 // pred_check
      _
    $region31: #{tpu_custom_call.1} parent=1 // pred_check_branch
      %81 = sbr.rel (0) target = $region33
    $region32: #{tpu_custom_call.1} parent=1 // pred_region
      _
    $region33: #{tpu_custom_call.1} parent=1 // pred_fallthru
      _
    // Predicated region
    $region34: #{tpu_custom_call.1} parent=1 // pred_check
      _
    $region35: #{tpu_custom_call.1} parent=1 // pred_check_branch
      %83 = sbr.rel (0) target = $region37
    $region36: #{tpu_custom_call.1} parent=1 // pred_region
      _
    $region37: #{tpu_custom_call.1} parent=1 // pred_fallthru
      _
    // Predicated region
    $region38: #{tpu_custom_call.1} parent=1 // pred_check
      _
    $region39: #{tpu_custom_call.1} parent=1 // pred_check_branch
      %85 = sbr.rel (0) target = $region41
    $region40: #{tpu_custom_call.1} parent=1 // pred_region
      _
    $region41: #{tpu_custom_call.1} parent=1 // pred_fallthru
      _
    // Predicated region
    $region42: #{tpu_custom_call.1} parent=1 // pred_check
      _
    $region43: #{tpu_custom_call.1} parent=1 // pred_check_branch
      %87 = sbr.rel (0) target = $region45
    $region44: #{tpu_custom_call.1} parent=1 // pred_region
      _
    $region45: #{tpu_custom_call.1} parent=1 // pred_fallthru
      _
    // Predicated region
    $region46: #{tpu_custom_call.1} parent=1 // pred_check
      _
    $region47: #{tpu_custom_call.1} parent=1 // pred_check_branch
      %89 = sbr.rel (0) target = $region49
    $region48: #{tpu_custom_call.1} parent=1 // pred_region
      _
    $region49: #{tpu_custom_call.1} parent=1 // pred_fallthru
      _
    // Predicated region
    $region50: #{tpu_custom_call.1} parent=1 // pred_check
      _
    $region51: #{tpu_custom_call.1} parent=1 // pred_check_branch
      %91 = sbr.rel (0) target = $region53
    $region52: #{tpu_custom_call.1} parent=1 // pred_region
      _
    $region53: #{tpu_custom_call.1} parent=1 // pred_fallthru
      _
    // Predicated region
    $region54: #{tpu_custom_call.1} parent=1 // pred_check
      _
    $region55: #{tpu_custom_call.1} parent=1 // pred_check_branch
      %93 = sbr.rel (0) target = $region57
    $region56: #{tpu_custom_call.1} parent=1 // pred_region
      %94 = dma.done [#allocation4], 128
    $region57: #{tpu_custom_call.1} parent=1 // pred_fallthru
      _
    // Predicated region
    $region58: #{tpu_custom_call.1} parent=1 // pred_check
      _
    $region59: #{tpu_custom_call.1} parent=1 // pred_check_branch
      %96 = sbr.rel (0) target = $region61
    $region60: #{tpu_custom_call.1} parent=1 // pred_region
      %97 = dma.done [#allocation6], 128
    $region61: #{tpu_custom_call.1} parent=1 // pred_fallthru
      _
    // Predicated region
    $region62: #{tpu_custom_call.1} parent=1 // pred_check
      _
    $region63: #{tpu_custom_call.1} parent=1 // pred_check_branch
      %99 = sbr.rel (0) target = $region65
    $region64: #{tpu_custom_call.1} parent=1 // pred_region
      %100 = dma.done [#allocation6], 256
    $region65: #{tpu_custom_call.1} parent=1 // pred_fallthru
      _
    // Predicated region
    $region66: #{tpu_custom_call.1} parent=1 // pred_check
      _
    $region67: #{tpu_custom_call.1} parent=1 // pred_check_branch
      %102 = sbr.rel (0) target = $region69
    $region68: #{tpu_custom_call.1} parent=1 // pred_region
      %103 = dma.done [#allocation9], 256
    $region69: #{tpu_custom_call.1} parent=1 // pred_fallthru
      _
    // Predicated region
    $region70: #{tpu_custom_call.1} parent=1 // pred_check
      _
    $region71: #{tpu_custom_call.1} parent=1 // pred_check_branch
      %105 = sbr.rel (0) target = $region73
    $region72: #{tpu_custom_call.1} parent=1 // pred_region
      %106 = dma.done [#allocation9], 16
    $region73: #{tpu_custom_call.1} parent=1 // pred_fallthru
      _
    %v107 = vld [vmem:[#allocation3] sm:$0xff]
    %v108 = vld [vmem:[#allocation5] sm:$0xff]
    %vm109 = vweird.f32 %v108
    %vm110 = vmxor %vm109, 1
    %v111 = vsel %vm110, 1.0, 0.0
    %vm112 = vcmask 130048
    %v113 = vsel %vm112, %v111, inf
    %114 = vmin.xlane.f32.xlu0 %v113
    %v115 = vpop.xlane.xlu0 %114
    %vm116 = vcmp.gt.f32.partialorder %v115, 0.0
    %v117 = vsel %vm116, 1, 0
    %v118 = vcvt.s32.f32 %v117
    %v119 = vmul.f32 %v108, %v118
    %v120 = vld [vmem:[#allocation7] sm:$0xff]
    %v121 = vld [vmem:[#allocation7 + $0x8] sm:$0xff]
    %v122 = vld [vmem:[#allocation8] sm:$0xff]
    %v123 = vld [vmem:[#allocation8 + $0x8] sm:$0xff]
    %v125 = vsel %vm112, %v119, 0
    %127 = vmatprep.subr.mxu0 0.0
    %128 = vmatpush1.msra.mxu0 %v122
    %129 = vmatprep.subr.mxu0 0.0
    %130 = vmatpush1.msra.mxu0 %v123
    %131 = vmatprep.subr.mxu0 0.0
    %132 = vmatpush1.msra.mxu0 0.0
    %133 = vmatprep.subr.mxu0 0.0
    %134 = vmatpush1.msra.mxu0 0.0
    %135 = vmatprep.subr.mxu0 0.0
    %136 = vmatpush1.msra.mxu0 0.0
    %137 = vmatprep.subr.mxu0 0.0
    %138 = vmatpush1.msra.mxu0 0.0
    %139 = vmatprep.subr.mxu0 0.0
    %140 = vmatpush1.msra.mxu0 0.0
    %141 = vmatprep.subr.mxu0 0.0
    %142 = vmatpush1.msra.mxu0 0.0
    %143 = vmatprep.subr.mxu0 0.0
    %144 = vmatpush1.msra.mxu0 0.0
    %145 = vmatprep.subr.mxu0 0.0
    %146 = vmatpush1.msra.mxu0 0.0
    %147 = vmatprep.subr.mxu0 0.0
    %148 = vmatpush1.msra.mxu0 0.0
    %149 = vmatprep.subr.mxu0 0.0
    %150 = vmatpush1.msra.mxu0 0.0
    %151 = vmatprep.subr.mxu0 0.0
    %152 = vmatpush1.msra.mxu0 0.0
    %153 = vmatprep.subr.mxu0 0.0
    %154 = vmatpush1.msra.mxu0 0.0
    %155 = vmatprep.subr.mxu0 0.0
    %156 = vmatpush1.msra.mxu0 0.0
    %157 = vmatprep.subr.mxu0 0.0
    %158 = vmatpush1.msra.mxu0 0.0
    %159 = vmatprep.subr.mxu0 0.0
    %160 = vmatpush1.msra.mxu0 0.0
    %161 = vmatprep.subr.mxu0 0.0
    %162 = vmatpush1.msra.mxu0 0.0
    %163 = vmatprep.subr.mxu0 0.0
    %164 = vmatpush1.msra.mxu0 0.0
    %165 = vmatprep.subr.mxu0 0.0
    %166 = vmatpush1.msra.mxu0 0.0
    %167 = vmatprep.subr.mxu0 0.0
    %168 = vmatpush1.msra.mxu0 0.0
    %169 = vmatprep.subr.mxu0 0.0
    %170 = vmatpush1.msra.mxu0 0.0
    %171 = vmatprep.subr.mxu0 0.0
    %172 = vmatpush1.msra.mxu0 0.0
    %173 = vmatprep.subr.mxu0 0.0
    %174 = vmatpush1.msra.mxu0 0.0
    %175 = vmatprep.subr.mxu0 0.0
    %176 = vmatpush1.msra.mxu0 0.0
    %177 = vmatprep.subr.mxu0 0.0
    %178 = vmatpush1.msra.mxu0 0.0
    %179 = vmatprep.subr.mxu0 0.0
    %180 = vmatpush1.msra.mxu0 0.0
    %181 = vmatprep.subr.mxu0 0.0
    %182 = vmatpush1.msra.mxu0 0.0
    %183 = vmatprep.subr.mxu0 0.0
    %184 = vmatpush1.msra.mxu0 0.0
    %185 = vmatprep.subr.mxu0 0.0
    %186 = vmatpush1.msra.mxu0 0.0
    %187 = vmatprep.subr.mxu0 0.0
    %188 = vmatpush1.msra.mxu0 0.0
    %189 = vmatprep.subr.mxu0 0.0
    %190 = vmatpush1.msra.mxu0 0.0
    %191 = vmatprep.mubr.f32.mxu0 0.0
    %192 = vmatmul.mubr.f32.gmra.mrb[0].mxu0 %v125
    %v193 = vpop.f32.mrb[0].mxu0
    %v194 = vadd.f32 0.0, %v193
    %v195 = vpop.f32.mrb[0].mxu0
    %196 = vdwg.mxu0
    %v198 = vsel %vm112, %v107, 0
    %200 = vmatprep.subr.mxu0 0.0
    %201 = vmatpush1.msra.mxu0 %v120
    %202 = vmatprep.subr.mxu0 0.0
    %203 = vmatpush1.msra.mxu0 %v121
    %204 = vmatprep.subr.mxu0 0.0
    %205 = vmatpush1.msra.mxu0 0.0
    %206 = vmatprep.subr.mxu0 0.0
    %207 = vmatpush1.msra.mxu0 0.0
    %208 = vmatprep.subr.mxu0 0.0
    %209 = vmatpush1.msra.mxu0 0.0
    %210 = vmatprep.subr.mxu0 0.0
    %211 = vmatpush1.msra.mxu0 0.0
    %212 = vmatprep.subr.mxu0 0.0
    %213 = vmatpush1.msra.mxu0 0.0
    %214 = vmatprep.subr.mxu0 0.0
    %215 = vmatpush1.msra.mxu0 0.0
    %216 = vmatprep.subr.mxu0 0.0
    %217 = vmatpush1.msra.mxu0 0.0
    %218 = vmatprep.subr.mxu0 0.0
    %219 = vmatpush1.msra.mxu0 0.0
    %220 = vmatprep.subr.mxu0 0.0
    %221 = vmatpush1.msra.mxu0 0.0
    %222 = vmatprep.subr.mxu0 0.0
    %223 = vmatpush1.msra.mxu0 0.0
    %224 = vmatprep.subr.mxu0 0.0
    %225 = vmatpush1.msra.mxu0 0.0
    %226 = vmatprep.subr.mxu0 0.0
    %227 = vmatpush1.msra.mxu0 0.0
    %228 = vmatprep.subr.mxu0 0.0
    %229 = vmatpush1.msra.mxu0 0.0
    %230 = vmatprep.subr.mxu0 0.0
    %231 = vmatpush1.msra.mxu0 0.0
    %232 = vmatprep.subr.mxu0 0.0
    %233 = vmatpush1.msra.mxu0 0.0
    %234 = vmatprep.subr.mxu0 0.0
    %235 = vmatpush1.msra.mxu0 0.0
    %236 = vmatprep.subr.mxu0 0.0
    %237 = vmatpush1.msra.mxu0 0.0
    %238 = vmatprep.subr.mxu0 0.0
    %239 = vmatpush1.msra.mxu0 0.0
    %240 = vmatprep.subr.mxu0 0.0
    %241 = vmatpush1.msra.mxu0 0.0
    %242 = vmatprep.subr.mxu0 0.0
    %243 = vmatpush1.msra.mxu0 0.0
    %244 = vmatprep.subr.mxu0 0.0
    %245 = vmatpush1.msra.mxu0 0.0
    %246 = vmatprep.subr.mxu0 0.0
    %247 = vmatpush1.msra.mxu0 0.0
    %248 = vmatprep.subr.mxu0 0.0
    %249 = vmatpush1.msra.mxu0 0.0
    %250 = vmatprep.subr.mxu0 0.0
    %251 = vmatpush1.msra.mxu0 0.0
    %252 = vmatprep.subr.mxu0 0.0
    %253 = vmatpush1.msra.mxu0 0.0
    %254 = vmatprep.subr.mxu0 0.0
    %255 = vmatpush1.msra.mxu0 0.0
    %256 = vmatprep.subr.mxu0 0.0
    %257 = vmatpush1.msra.mxu0 0.0
    %258 = vmatprep.subr.mxu0 0.0
    %259 = vmatpush1.msra.mxu0 0.0
    %260 = vmatprep.subr.mxu0 0.0
    %261 = vmatpush1.msra.mxu0 0.0
    %262 = vmatprep.subr.mxu0 0.0
    %263 = vmatpush1.msra.mxu0 0.0
    %264 = vmatprep.mubr.f32.mxu0 0.0
    %265 = vmatmul.mubr.f32.gmra.mrb[0].mxu0 %v198
    %v266 = vpop.f32.mrb[0].mxu0
    %v267 = vadd.f32 %v194, %v266
    %v268 = vpop.f32.mrb[0].mxu0
    %269 = vdwg.mxu0
    %v270 = vld [vmem:[#allocation10] sm:$0x1]
    %v272 = vlaneseq
    %v273 = vshrl.u32 %v272, 7
    %v274 = vsub.s32 0, %v273
    %v275 = vrot.slane %v270, %v274
    %v277 = vadd.f32 %v267, %v275
    %v278 = vmax.f32 %v277, 0.0
    %v279 = vld [vmem:[%s5] sm:$0xff]
    %v280 = vld [vmem:[%s5 + $0x8] sm:$0xff]
    %v281 = vld [vmem:[%s5 + $0x10] sm:$0xff]
    %v282 = vld [vmem:[%s5 + $0x18] sm:$0xff]
    %v283 = vld [vmem:[%s6] sm:$0x1]
    %v285 = vlaneseq
    %v286 = vshrl.u32 %v285, 7
    %v287 = vsub.s32 0, %v286
    %v288 = vrot.slane %v283, %v287
    %vm290 = vcmask 261120
    %v292 = vsel %vm290, %v278, 0
    %294 = vmatprep.subr.mxu0 0.0
    %295 = vmatpush1.msra.mxu0 %v279
    %296 = vmatprep.subr.mxu0 0.0
    %297 = vmatpush1.msra.mxu0 %v280
    %298 = vmatprep.subr.mxu0 0.0
    %299 = vmatpush1.msra.mxu0 %v281
    %300 = vmatprep.subr.mxu0 0.0
    %301 = vmatpush1.msra.mxu0 %v282
    %302 = vmatprep.subr.mxu0 0.0
    %303 = vmatpush1.msra.mxu0 0.0
    %304 = vmatprep.subr.mxu0 0.0
    %305 = vmatpush1.msra.mxu0 0.0
    %306 = vmatprep.subr.mxu0 0.0
    %307 = vmatpush1.msra.mxu0 0.0
    %308 = vmatprep.subr.mxu0 0.0
    %309 = vmatpush1.msra.mxu0 0.0
    %310 = vmatprep.subr.mxu0 0.0
    %311 = vmatpush1.msra.mxu0 0.0
    %312 = vmatprep.subr.mxu0 0.0
    %313 = vmatpush1.msra.mxu0 0.0
    %314 = vmatprep.subr.mxu0 0.0
    %315 = vmatpush1.msra.mxu0 0.0
    %316 = vmatprep.subr.mxu0 0.0
    %317 = vmatpush1.msra.mxu0 0.0
    %318 = vmatprep.subr.mxu0 0.0
    %319 = vmatpush1.msra.mxu0 0.0
    %320 = vmatprep.subr.mxu0 0.0
    %321 = vmatpush1.msra.mxu0 0.0
    %322 = vmatprep.subr.mxu0 0.0
    %323 = vmatpush1.msra.mxu0 0.0
    %324 = vmatprep.subr.mxu0 0.0
    %325 = vmatpush1.msra.mxu0 0.0
    %326 = vmatprep.subr.mxu0 0.0
    %327 = vmatpush1.msra.mxu0 0.0
    %328 = vmatprep.subr.mxu0 0.0
    %329 = vmatpush1.msra.mxu0 0.0
    %330 = vmatprep.subr.mxu0 0.0
    %331 = vmatpush1.msra.mxu0 0.0
    %332 = vmatprep.subr.mxu0 0.0
    %333 = vmatpush1.msra.mxu0 0.0
    %334 = vmatprep.subr.mxu0 0.0
    %335 = vmatpush1.msra.mxu0 0.0
    %336 = vmatprep.subr.mxu0 0.0
    %337 = vmatpush1.msra.mxu0 0.0
    %338 = vmatprep.subr.mxu0 0.0
    %339 = vmatpush1.msra.mxu0 0.0
    %340 = vmatprep.subr.mxu0 0.0
    %341 = vmatpush1.msra.mxu0 0.0
    %342 = vmatprep.subr.mxu0 0.0
    %343 = vmatpush1.msra.mxu0 0.0
    %344 = vmatprep.subr.mxu0 0.0
    %345 = vmatpush1.msra.mxu0 0.0
    %346 = vmatprep.subr.mxu0 0.0
    %347 = vmatpush1.msra.mxu0 0.0
    %348 = vmatprep.subr.mxu0 0.0
    %349 = vmatpush1.msra.mxu0 0.0
    %350 = vmatprep.subr.mxu0 0.0
    %351 = vmatpush1.msra.mxu0 0.0
    %352 = vmatprep.subr.mxu0 0.0
    %353 = vmatpush1.msra.mxu0 0.0
    %354 = vmatprep.subr.mxu0 0.0
    %355 = vmatpush1.msra.mxu0 0.0
    %356 = vmatprep.subr.mxu0 0.0
    %357 = vmatpush1.msra.mxu0 0.0
    %358 = vmatprep.mubr.f32.mxu0 0.0
    %359 = vmatmul.mubr.f32.gmra.mrb[0].mxu0 %v292
    %v360 = vpop.f32.mrb[0].mxu0
    %v361 = vadd.f32 %v288, %v360
    %v362 = vpop.f32.mrb[0].mxu0
    %363 = vdwg.mxu0
    %v364 = vmax.f32 %v361, 0.0
    %v365 = vld [vmem:[%s7] sm:$0xff]
    %v366 = vld [vmem:[%s7 + $0x8] sm:$0xff]
    %v367 = vld [vmem:[%s7 + $0x10] sm:$0xff]
    %v368 = vld [vmem:[%s7 + $0x18] sm:$0xff]
    %v369 = vld [vmem:[%s8] sm:$0x1]
    %v371 = vlaneseq
    %v372 = vshrl.u32 %v371, 7
    %v373 = vsub.s32 0, %v372
    %v374 = vrot.slane %v369, %v373
    %v377 = vsel %vm290, %v364, 0
    %379 = vmatprep.subr.mxu0 0.0
    %380 = vmatpush1.msra.mxu0 %v365
    %381 = vmatprep.subr.mxu0 0.0
    %382 = vmatpush1.msra.mxu0 %v366
    %383 = vmatprep.subr.mxu0 0.0
    %384 = vmatpush1.msra.mxu0 %v367
    %385 = vmatprep.subr.mxu0 0.0
    %386 = vmatpush1.msra.mxu0 %v368
    %387 = vmatprep.subr.mxu0 0.0
    %388 = vmatpush1.msra.mxu0 0.0
    %389 = vmatprep.subr.mxu0 0.0
    %390 = vmatpush1.msra.mxu0 0.0
    %391 = vmatprep.subr.mxu0 0.0
    %392 = vmatpush1.msra.mxu0 0.0
    %393 = vmatprep.subr.mxu0 0.0
    %394 = vmatpush1.msra.mxu0 0.0
    %395 = vmatprep.subr.mxu0 0.0
    %396 = vmatpush1.msra.mxu0 0.0
    %397 = vmatprep.subr.mxu0 0.0
    %398 = vmatpush1.msra.mxu0 0.0
    %399 = vmatprep.subr.mxu0 0.0
    %400 = vmatpush1.msra.mxu0 0.0
    %401 = vmatprep.subr.mxu0 0.0
    %402 = vmatpush1.msra.mxu0 0.0
    %403 = vmatprep.subr.mxu0 0.0
    %404 = vmatpush1.msra.mxu0 0.0
    %405 = vmatprep.subr.mxu0 0.0
    %406 = vmatpush1.msra.mxu0 0.0
    %407 = vmatprep.subr.mxu0 0.0
    %408 = vmatpush1.msra.mxu0 0.0
    %409 = vmatprep.subr.mxu0 0.0
    %410 = vmatpush1.msra.mxu0 0.0
    %411 = vmatprep.subr.mxu0 0.0
    %412 = vmatpush1.msra.mxu0 0.0
    %413 = vmatprep.subr.mxu0 0.0
    %414 = vmatpush1.msra.mxu0 0.0
    %415 = vmatprep.subr.mxu0 0.0
    %416 = vmatpush1.msra.mxu0 0.0
    %417 = vmatprep.subr.mxu0 0.0
    %418 = vmatpush1.msra.mxu0 0.0
    %419 = vmatprep.subr.mxu0 0.0
    %420 = vmatpush1.msra.mxu0 0.0
    %421 = vmatprep.subr.mxu0 0.0
    %422 = vmatpush1.msra.mxu0 0.0
    %423 = vmatprep.subr.mxu0 0.0
    %424 = vmatpush1.msra.mxu0 0.0
    %425 = vmatprep.subr.mxu0 0.0
    %426 = vmatpush1.msra.mxu0 0.0
    %427 = vmatprep.subr.mxu0 0.0
    %428 = vmatpush1.msra.mxu0 0.0
    %429 = vmatprep.subr.mxu0 0.0
    %430 = vmatpush1.msra.mxu0 0.0
    %431 = vmatprep.subr.mxu0 0.0
    %432 = vmatpush1.msra.mxu0 0.0
    %433 = vmatprep.subr.mxu0 0.0
    %434 = vmatpush1.msra.mxu0 0.0
    %435 = vmatprep.subr.mxu0 0.0
    %436 = vmatpush1.msra.mxu0 0.0
    %437 = vmatprep.subr.mxu0 0.0
    %438 = vmatpush1.msra.mxu0 0.0
    %439 = vmatprep.subr.mxu0 0.0
    %440 = vmatpush1.msra.mxu0 0.0
    %441 = vmatprep.subr.mxu0 0.0
    %442 = vmatpush1.msra.mxu0 0.0
    %443 = vmatprep.mubr.f32.mxu0 0.0
    %444 = vmatmul.mubr.f32.gmra.mrb[0].mxu0 %v377
    %v445 = vpop.f32.mrb[0].mxu0
    %v446 = vadd.f32 %v374, %v445
    %v447 = vpop.f32.mrb[0].mxu0
    %448 = vdwg.mxu0
    %v449 = vmax.f32 %v446, 0.0
    %v450 = vld [vmem:[%s9] sm:$0xff]
    %v451 = vld [vmem:[%s9 + $0x8] sm:$0xff]
    %v452 = vld [vmem:[%s9 + $0x10] sm:$0xff]
    %v453 = vld [vmem:[%s9 + $0x18] sm:$0xff]
    %v454 = vld [vmem:[%s10] sm:$0x3]
    %v456 = vlaneseq
    %v457 = vshrl.u32 %v456, 7
    %v458 = vsub.s32 0, %v457
    %v459 = vrot.slane %v454, %v458
    %v460 = vlaneseq
    %v461 = vshrl.u32 %v460, 7
    %v462 = vsub.s32 1, %v461
    %v463 = vrot.slane %v454, %v462
    %v467 = vsel %vm112, %v449, 0
    %469 = vmatprep.subr.mxu0 %v451
    %470 = vmatpush1.msra.mxu0 %v450
    %471 = vmatprep.subr.mxu0 %v453
    %472 = vmatpush1.msra.mxu0 %v452
    %473 = vmatprep.subr.mxu0 0.0
    %474 = vmatpush1.msra.mxu0 0.0
    %475 = vmatprep.subr.mxu0 0.0
    %476 = vmatpush1.msra.mxu0 0.0
    %477 = vmatprep.subr.mxu0 0.0
    %478 = vmatpush1.msra.mxu0 0.0
    %479 = vmatprep.subr.mxu0 0.0
    %480 = vmatpush1.msra.mxu0 0.0
    %481 = vmatprep.subr.mxu0 0.0
    %482 = vmatpush1.msra.mxu0 0.0
    %483 = vmatprep.subr.mxu0 0.0
    %484 = vmatpush1.msra.mxu0 0.0
    %485 = vmatprep.subr.mxu0 0.0
    %486 = vmatpush1.msra.mxu0 0.0
    %487 = vmatprep.subr.mxu0 0.0
    %488 = vmatpush1.msra.mxu0 0.0
    %489 = vmatprep.subr.mxu0 0.0
    %490 = vmatpush1.msra.mxu0 0.0
    %491 = vmatprep.subr.mxu0 0.0
    %492 = vmatpush1.msra.mxu0 0.0
    %493 = vmatprep.subr.mxu0 0.0
    %494 = vmatpush1.msra.mxu0 0.0
    %495 = vmatprep.subr.mxu0 0.0
    %496 = vmatpush1.msra.mxu0 0.0
    %497 = vmatprep.subr.mxu0 0.0
    %498 = vmatpush1.msra.mxu0 0.0
    %499 = vmatprep.subr.mxu0 0.0
    %500 = vmatpush1.msra.mxu0 0.0
    %501 = vmatprep.subr.mxu0 0.0
    %502 = vmatpush1.msra.mxu0 0.0
    %503 = vmatprep.subr.mxu0 0.0
    %504 = vmatpush1.msra.mxu0 0.0
    %505 = vmatprep.subr.mxu0 0.0
    %506 = vmatpush1.msra.mxu0 0.0
    %507 = vmatprep.subr.mxu0 0.0
    %508 = vmatpush1.msra.mxu0 0.0
    %509 = vmatprep.subr.mxu0 0.0
    %510 = vmatpush1.msra.mxu0 0.0
    %511 = vmatprep.subr.mxu0 0.0
    %512 = vmatpush1.msra.mxu0 0.0
    %513 = vmatprep.subr.mxu0 0.0
    %514 = vmatpush1.msra.mxu0 0.0
    %515 = vmatprep.subr.mxu0 0.0
    %516 = vmatpush1.msra.mxu0 0.0
    %517 = vmatprep.subr.mxu0 0.0
    %518 = vmatpush1.msra.mxu0 0.0
    %519 = vmatprep.subr.mxu0 0.0
    %520 = vmatpush1.msra.mxu0 0.0
    %521 = vmatprep.subr.mxu0 0.0
    %522 = vmatpush1.msra.mxu0 0.0
    %523 = vmatprep.subr.mxu0 0.0
    %524 = vmatpush1.msra.mxu0 0.0
    %525 = vmatprep.subr.mxu0 0.0
    %526 = vmatpush1.msra.mxu0 0.0
    %527 = vmatprep.subr.mxu0 0.0
    %528 = vmatpush1.msra.mxu0 0.0
    %529 = vmatprep.subr.mxu0 0.0
    %530 = vmatpush1.msra.mxu0 0.0
    %531 = vmatprep.subr.mxu0 0.0
    %532 = vmatpush1.msra.mxu0 0.0
    %533 = vmatprep.mubr.f32.mxu0 0.0
    %534 = vmatmul.mubr.f32.gmra.mrb[0].mxu0 %v467
    %v535 = vpop.f32.mrb[0].mxu0
    %v536 = vadd.f32 %v459, %v535
    %v537 = vpop.f32.mrb[0].mxu0
    %v538 = vadd.f32 %v463, %v537
    %539 = vdwg.mxu0
    %v540 = vmax.f32 %v536, 0.0
    %v541 = vmax.f32 %v538, 0.0
    %v542 = vld [vmem:[%s11] sm:$0x3]
    %v544 = vlaneseq
    %v545 = vshrl.u32 %v544, 7
    %v546 = vsub.s32 0, %v545
    %v547 = vrot.slane %v542, %v546
    %v548 = vlaneseq
    %v549 = vshrl.u32 %v548, 7
    %v550 = vsub.s32 1, %v549
    %v551 = vrot.slane %v542, %v550
    %v554 = vmul.f32 %v540, %v547
    %v555 = vmul.f32 %v541, %v551
    %v556 = vadd.f32 %v554, %v555
    %557 = vadd.xlane.f32.xlu0 %v556
    %v558 = vpop.xlane.xlu0 %557
    %s559 = sld [smem:[#allocation2]]
    %v560 = vstv %s559
    %v561 = vadd.f32 %v558, %v560
    %vm562 = vcmask 7168
    %563 = vst.msk [vmem:[%s13] sm:$0xff] %vm562, %v561
    // Predicated region
    $region74: #{tpu_custom_call.1} parent=1 // pred_check
      _
    $region75: #{tpu_custom_call.1} parent=1 // pred_check_branch
      %565 = sbr.rel (0) target = $region77
    $region76: #{tpu_custom_call.1} parent=1 // pred_region
      _
    $region77: #{tpu_custom_call.1} parent=1 // pred_fallthru
      _
    // Predicated region
    $region78: #{tpu_custom_call.1} parent=1 // pred_check
      _
    $region79: #{tpu_custom_call.1} parent=1 // pred_check_branch
      %567 = sbr.rel (0) target = $region81
    $region80: #{tpu_custom_call.1} parent=1 // pred_region
      _
    $region81: #{tpu_custom_call.1} parent=1 // pred_fallthru
      _
    %568 = vsyncpa [#allocation4], 1
    %569 = vsyncpa [#allocation6], 1
    %570 = vsyncpa [#allocation9], 1

</llo_original>
